<compile_context>
chip_gen: v6e
topology: v6e:2x2x1
jax: 0.10.0
libtpu: 0.0.40
codegen_flags: <defaults>
</compile_context>

<pallas_src>
import jax
import jax.numpy as jnp
from jax.experimental import pallas as pl
from jax.experimental.pallas import tpu as pltpu


# ---------------------------------------------------------------------------
# Glue: align_corners=True bilinear interpolation matrix (out_size, in_size).
# Rows sum to 1 (partition of unity), two non-zeros per row.
# ---------------------------------------------------------------------------
def bilinear_matrix(in_size: int, out_size: int) -> jnp.ndarray:
    if out_size == 1:
        src = jnp.zeros((1,), jnp.float32)
    else:
        src = jnp.arange(out_size, dtype=jnp.float32) * (in_size - 1) / (out_size - 1)
    i0 = jnp.clip(jnp.floor(src).astype(jnp.int32), 0, in_size - 1)
    i1 = jnp.clip(i0 + 1, 0, in_size - 1)
    frac = src - i0.astype(jnp.float32)
    m = ((1.0 - frac)[:, None] * jax.nn.one_hot(i0, in_size, dtype=jnp.float32)
         + frac[:, None] * jax.nn.one_hot(i1, in_size, dtype=jnp.float32))
    return m  # (out_size, in_size)


# ---------------------------------------------------------------------------
# Pallas kernel: one full decoder stage (all N samples) in a single invocation.
# ---------------------------------------------------------------------------
def _decoder_stage_kernel(x_ref, wc_ref, mt_ref, b_ref, o_ref):
    # x_ref : (N, C_in, H*W)     features, spatial flattened into the lane dim
    # wc_ref: (C_out, C_in)      1x1-conv weight
    # mt_ref: (H*W, Ho*Wo)       kron(Wh, Ww)^T  (fused separable bilinear)
    # b_ref : (N*C_out, 1)       conv bias, tiled over the batch rows
    # o_ref : (N*C_out, Ho*Wo)   output, lane-dense
    n, c_in, hw = x_ref.shape
    c_out = wc_ref.shape[0]

    x = x_ref[...]
    wc = wc_ref[...]

    # (1) 1x1 conv FIRST (commuted ahead of the upsample), batched over N.
    #     Output (N, C_out, H*W): lane dim stays H*W, no transposes.
    wcb = jnp.broadcast_to(wc[None], (n, c_out, c_in))
    y = jnp.einsum('nkc,ncs->nks', wcb, x,
                   preferred_element_type=jnp.float32)

    # (2) Fold N into the matmul M dim (leading-dim merge only; lane dim and
    #     sublane tiling unchanged since C_out is a multiple of 8).
    y2 = y.reshape(n * c_out, hw)

    # (3) Both bilinear upsamples as ONE lane-dense 2D MXU matmul; last dim
    #     Ho*Wo >= 128 gives unmasked vector stores.  Bias added at the end
    #     (same placement as the original conv-after-upsample).
    out = jnp.dot(y2, mt_ref[...], preferred_element_type=jnp.float32)

    o_ref[...] = (out + b_ref[...]).astype(o_ref.dtype)


def segformer_decoder_block(x, wh, ww, wconv, bias):
    """One SegFormerDecoderBlock: x (N, C_in, H, W) -> (N, C_out, Ho, Wo)."""
    N, C_in, H, W = x.shape
    Ho, Wo = wh.shape[0], ww.shape[0]
    C_out = wconv.shape[0]
    HW, HoWo = H * W, Ho * Wo

    # Free row-major views: lane-dense input layout for the kernel.
    x_flat = x.reshape(N, C_in, HW)
    # Fused separable interpolation matrix: MT[h*W+w, p*Wo+q] = Wh[p,h]*Ww[q,w].
    mt = jnp.einsum('ph,qw->hwpq', wh, ww).reshape(HW, HoWo)
    # Bias per output row (row order is n-major, channel-minor).
    bias_rows = jnp.tile(bias, (N,)).reshape(N * C_out, 1)

    out = pl.pallas_call(
        _decoder_stage_kernel,
        out_shape=jax.ShapeDtypeStruct((N * C_out, HoWo), x.dtype),
        in_specs=[
            pl.BlockSpec(memory_space=pltpu.MemorySpace.VMEM),
            pl.BlockSpec(memory_space=pltpu.MemorySpace.VMEM),
            pl.BlockSpec(memory_space=pltpu.MemorySpace.VMEM),
            pl.BlockSpec(memory_space=pltpu.MemorySpace.VMEM),
        ],
        out_specs=pl.BlockSpec(memory_space=pltpu.MemorySpace.VMEM),
    )(x_flat, wconv, mt, bias_rows)

    # Free row-major view back to NCHW.
    return out.reshape(N, C_out, Ho, Wo)


# ---------------------------------------------------------------------------
# SegFormerDecoder: list of stages, one per feature.
# ---------------------------------------------------------------------------
class SegFormerDecoder:
    def __init__(self, out_channels, widths, scale_factors, key):
        self.out_channels = out_channels
        self.widths = list(widths)
        self.scale_factors = list(scale_factors)
        self.params = []
        for in_ch in self.widths:
            key, kw, kb = jax.random.split(key, 3)
            bound = 1.0 / (in_ch ** 0.5)
            wconv = jax.random.uniform(kw, (out_channels, in_ch), jnp.float32,
                                       -bound, bound)
            bias = jax.random.uniform(kb, (out_channels,), jnp.float32,
                                      -bound, bound)
            self.params.append((wconv, bias))

    def __call__(self, features):
        new_features = []
        for feature, scale, (wconv, bias) in zip(features, self.scale_factors,
                                                 self.params):
            N, C, H, W = feature.shape
            Ho, Wo = int(H * scale), int(W * scale)
            wh = bilinear_matrix(H, Ho)
            ww = bilinear_matrix(W, Wo)
            new_features.append(
                segformer_decoder_block(feature, wh, ww, wconv, bias))
        return new_features


# ---------------------------------------------------------------------------
# Pure-JAX reference (gather-based bilinear, align_corners=True) for validation
# ---------------------------------------------------------------------------
def _ref_block(x, scale, wconv, bias):
    N, C, H, W = x.shape
    Ho, Wo = int(H * scale), int(W * scale)
    hs = (jnp.arange(Ho, dtype=jnp.float32) * (H - 1) / (Ho - 1)
          if Ho > 1 else jnp.zeros((1,), jnp.float32))
    ws = (jnp.arange(Wo, dtype=jnp.float32) * (W - 1) / (Wo - 1)
          if Wo > 1 else jnp.zeros((1,), jnp.float32))
    h0 = jnp.clip(jnp.floor(hs).astype(jnp.int32), 0, H - 1)
    h1 = jnp.clip(h0 + 1, 0, H - 1)
    hf = (hs - h0.astype(jnp.float32))[:, None]
    w0 = jnp.clip(jnp.floor(ws).astype(jnp.int32), 0, W - 1)
    w1 = jnp.clip(w0 + 1, 0, W - 1)
    wf = ws - w0.astype(jnp.float32)

    top = x[:, :, h0][:, :, :, w0] * (1 - wf) + x[:, :, h0][:, :, :, w1] * wf
    bot = x[:, :, h1][:, :, :, w0] * (1 - wf) + x[:, :, h1][:, :, :, w1] * wf
    up = top * (1 - hf) + bot * hf
    y = jnp.einsum('kc,nchw->nkhw', wconv, up) + bias[None, :, None, None]
    return y


if __name__ == "__main__":
    key = jax.random.PRNGKey(0)
    key, k0, k1, k2, kp = jax.random.split(key, 5)

    out_channels = 8
    widths = [4, 8, 16]
    scale_factors = [2, 4, 8]

    # Features in NCHW, as PyTorch would provide.
    features = [
        jax.random.normal(k0, (2, 4, 16, 16), jnp.float32),
        jax.random.normal(k1, (2, 8, 8, 8), jnp.float32),
        jax.random.normal(k2, (2, 16, 4, 4), jnp.float32),
    ]

    decoder = SegFormerDecoder(out_channels, widths, scale_factors, kp)
    outs = decoder(features)
    outs = [jax.block_until_ready(o) for o in outs]

    # Validate against a gather-based pure-JAX reference.
    ok = True
    for feat, scale, (wconv, bias), out in zip(features, scale_factors,
                                               decoder.params, outs):
        ref = _ref_block(feat, scale, wconv, bias)
        if out.shape != ref.shape or not jnp.allclose(out, ref, atol=1e-4,
                                                      rtol=1e-4):
            ok = False

    if ok:
        print("KERNEL_OK")
    else:
        print("MISMATCH")
</pallas_src>

<mosaic_0001>
module attributes {stable_mosaic.version = 11 : i64} {
  func.func @_decoder_stage_kernel(%arg0: memref<2x4x256xf32, #tpu.memory_space<vmem>>, %arg1: memref<8x4xf32, #tpu.memory_space<vmem>>, %arg2: memref<256x1024xf32, #tpu.memory_space<vmem>>, %arg3: memref<16x1xf32, #tpu.memory_space<vmem>>, %arg4: memref<16x1024xf32, #tpu.memory_space<vmem>>) attributes {dimension_semantics = [], scalar_prefetch = 0 : i64, scratch_operands = 0 : i64, tpu.core_type = #tpu.core_type<tc>} {
    %c0 = arith.constant 0 : index
    %c0_0 = arith.constant 0 : index
    %c0_1 = arith.constant 0 : index
    %0 = vector.load %arg0[%c0, %c0_0, %c0_1] : memref<2x4x256xf32, #tpu.memory_space<vmem>>, vector<2x4x256xf32>
    %c0_2 = arith.constant 0 : index
    %c0_3 = arith.constant 0 : index
    %1 = vector.load %arg1[%c0_2, %c0_3] : memref<8x4xf32, #tpu.memory_space<vmem>>, vector<8x4xf32>
    %2 = vector.shape_cast %1 : vector<8x4xf32> to vector<1x8x4xf32>
    %3 = vector.shape_cast %2 : vector<1x8x4xf32> to vector<1x8x4xf32>
    %4 = vector.broadcast %3 : vector<1x8x4xf32> to vector<2x8x4xf32>
    "tpu.trace_start"() <{level = 10 : i32, message = "nkc,ncs->nks"}> : () -> ()
    %cst = arith.constant dense<0.000000e+00> : vector<2x8x256xf32>
    %5 = tpu.matmul %4, %0, %cst {dimension_numbers = #tpu.dot_dimension_numbers<[2], [1], [1], [2], [0, 0, 0, 1, 1, 2], [0], [0]>} : vector<2x8x4xf32>, vector<2x4x256xf32>, vector<2x8x256xf32> -> vector<2x8x256xf32>
    "tpu.trace_stop"() : () -> ()
    %6 = vector.shape_cast %5 : vector<2x8x256xf32> to vector<16x256xf32>
    %c0_4 = arith.constant 0 : index
    %c0_5 = arith.constant 0 : index
    %7 = vector.load %arg2[%c0_4, %c0_5] : memref<256x1024xf32, #tpu.memory_space<vmem>>, vector<256x1024xf32>
    %cst_6 = arith.constant dense<0.000000e+00> : vector<16x1024xf32>
    %8 = tpu.matmul %6, %7, %cst_6 {dimension_numbers = #tpu.dot_dimension_numbers<[1], [0], [0], [1], [0, 0, 1, 1], [], []>} : vector<16x256xf32>, vector<256x1024xf32>, vector<16x1024xf32> -> vector<16x1024xf32>
    %c0_7 = arith.constant 0 : index
    %c0_8 = arith.constant 0 : index
    %9 = vector.load %arg3[%c0_7, %c0_8] : memref<16x1xf32, #tpu.memory_space<vmem>>, vector<16x1xf32>
    %10 = vector.broadcast %9 : vector<16x1xf32> to vector<16x1024xf32>
    %11 = arith.addf %8, %10 : vector<16x1024xf32>
    %c0_9 = arith.constant 0 : index
    %c0_10 = arith.constant 0 : index
    %12 = vector.load %arg4[%c0_9, %c0_10] : memref<16x1024xf32, #tpu.memory_space<vmem>>, vector<16x1024xf32>
    tpu.vector_store %arg4[%c0_9, %c0_10], %11 {strides = array<i32>} : memref<16x1024xf32, #tpu.memory_space<vmem>>, vector<16x1024xf32>,
    return
  }
}

</mosaic_0001>

<llo_original>
// kernel: tpu_custom_call.1
$region0: #{tpu_custom_call.1}
  #allocation0 [shape = 'u32[]', space=smem, size = 0x4, offset = 0x4, fixed_abs, tag = 'smem constant byte address 0x4 - core index']
  #allocation1 [shape = 'u32[144,128]{1,0:T(1,128)}', space=vmem, size = 0x12000, scoped, tag = 'internal scratch']
  %s0 = inlined_call_operand.vmem [shape: f32[2,4,256], index: 0, kind: input, shape index: {}]
  %s1 = inlined_call_operand.vmem [shape: f32[8,4], index: 1, kind: input, shape index: {}]
  %s2 = inlined_call_operand.hbm [shape: f32[256,1024], index: 2, kind: input, shape index: {}]
  %s3 = inlined_call_operand.vmem [shape: f32[16,1], index: 3, kind: input, shape index: {}]
  %s4 = inlined_call_operand.hbm [shape: f32[16,1024], index: 4, kind: output, shape index: {}]
  %s5 = sld [smem:[#allocation0]]
  $region30: #{tpu_custom_call.1} parent=0
    _
  %s7 = ssub.s32 1, %s5
  %s8 = scalar_select 0, %s7, %s5
  $region1: #{tpu_custom_call.1} parent=0
    #allocation2 [shape = 'u8[1048576]{0}', space=vmem, size = 0x100000, scoped, tag = 'input window, operand 2, single buffered']
    #allocation3 [shape = 's32[1]{0}', space=sflag, size = 0x4, scoped, tag = 'scoped memory for tpu_custom_call.1']
    #allocation4 [shape = 's32[1]{0}', space=sflag, size = 0x4, scoped, tag = 'scoped memory for tpu_custom_call.1']
    #allocation5 [shape = 'u8[65536]{0}', space=vmem, size = 0x10000, scoped, tag = 'output window, operand 0, single buffered']
    %9 = vsyncpa [#allocation3], 0
    %10 = vsyncpa [#allocation4], 0
    // Predicated region
    $region2: #{tpu_custom_call.1} parent=1 // pred_check
      _
    $region3: #{tpu_custom_call.1} parent=1 // pred_check_branch
      %12 = sbr.rel (0) target = $region5
    $region4: #{tpu_custom_call.1} parent=1 // pred_region
      _
    $region5: #{tpu_custom_call.1} parent=1 // pred_fallthru
      _
    // Predicated region
    $region6: #{tpu_custom_call.1} parent=1 // pred_check
      _
    $region7: #{tpu_custom_call.1} parent=1 // pred_check_branch
      %14 = sbr.rel (0) target = $region9
    $region8: #{tpu_custom_call.1} parent=1 // pred_region
      _
    $region9: #{tpu_custom_call.1} parent=1 // pred_fallthru
      _
    // Predicated region
    $region10: #{tpu_custom_call.1} parent=1 // pred_check
      _
    $region11: #{tpu_custom_call.1} parent=1 // pred_check_branch
      %16 = sbr.rel (0) target = $region13
    $region12: #{tpu_custom_call.1} parent=1 // pred_region
      %s18 = ssub.s32 32768, 32768
      %19 = vsyncadd [#allocation3], %s18
      %s20 = sshll.u32 [#allocation2], 4
      %s21 = int_to_ptr.vmem [resolvable:$true] %s20
      %26 = dma.hbm_to_vmem [thread:$0]  %s2, 32768, %s21, [#allocation3], 1024, 1024, 64
    $region13: #{tpu_custom_call.1} parent=1 // pred_fallthru
      _
    // Predicated region
    $region14: #{tpu_custom_call.1} parent=1 // pred_check
      _
    $region15: #{tpu_custom_call.1} parent=1 // pred_check_branch
      %28 = sbr.rel (0) target = $region17
    $region16: #{tpu_custom_call.1} parent=1 // pred_region
      _
    $region17: #{tpu_custom_call.1} parent=1 // pred_fallthru
      _
    // Predicated region
    $region18: #{tpu_custom_call.1} parent=1 // pred_check
      _
    $region19: #{tpu_custom_call.1} parent=1 // pred_check_branch
      %30 = sbr.rel (0) target = $region21
    $region20: #{tpu_custom_call.1} parent=1 // pred_region
      %31 = dma.done [#allocation3], 32768
    $region21: #{tpu_custom_call.1} parent=1 // pred_fallthru
      _
    %v32 = vld [vmem:[%s0] sm:$0xff]
    %v33 = vld [vmem:[%s0 + $0x8] sm:$0xff]
    %v34 = vld [vmem:[%s1] sm:$0xff]
    %v36 = vcombine.high %v32, %v32
    %vm37 = vcmask 31744
    %v39 = vsel %vm37, %v34, 0
    %vm41 = vcmask 1043456
    %v42 = vsel %vm41, %v32, 0
    %v44 = vsel %vm41, %v36, 0
    %46 = vmatprep.subr.mxu0 0.0
    %47 = vmatpush1.msra.mxu0 0.0
    %48 = vmatprep.subr.mxu0 0.0
    %49 = vmatpush1.msra.mxu0 0.0
    %50 = vmatprep.subr.mxu0 0.0
    %51 = vmatpush1.msra.mxu0 0.0
    %52 = vmatprep.subr.mxu0 0.0
    %53 = vmatpush1.msra.mxu0 0.0
    %54 = vmatprep.subr.mxu0 0.0
    %55 = vmatpush1.msra.mxu0 0.0
    %56 = vmatprep.subr.mxu0 0.0
    %57 = vmatpush1.msra.mxu0 0.0
    %58 = vmatprep.subr.mxu0 0.0
    %59 = vmatpush1.msra.mxu0 0.0
    %60 = vmatprep.subr.mxu0 0.0
    %61 = vmatpush1.msra.mxu0 0.0
    %62 = vmatprep.subr.mxu0 0.0
    %63 = vmatpush1.msra.mxu0 0.0
    %64 = vmatprep.subr.mxu0 0.0
    %65 = vmatpush1.msra.mxu0 0.0
    %66 = vmatprep.subr.mxu0 0.0
    %67 = vmatpush1.msra.mxu0 0.0
    %68 = vmatprep.subr.mxu0 0.0
    %69 = vmatpush1.msra.mxu0 0.0
    %70 = vmatprep.subr.mxu0 0.0
    %71 = vmatpush1.msra.mxu0 0.0
    %72 = vmatprep.subr.mxu0 0.0
    %73 = vmatpush1.msra.mxu0 0.0
    %74 = vmatprep.subr.mxu0 0.0
    %75 = vmatpush1.msra.mxu0 0.0
    %76 = vmatprep.subr.mxu0 %v44
    %77 = vmatpush1.msra.mxu0 %v42
    %78 = vmatprep.subr.mxu0 0.0
    %79 = vmatpush2.msra.mxu0 0.0
    %80 = vmatprep.subr.mxu0 0.0
    %81 = vmatpush2.msra.mxu0 0.0
    %82 = vmatprep.subr.mxu0 0.0
    %83 = vmatpush2.msra.mxu0 0.0
    %84 = vmatprep.subr.mxu0 0.0
    %85 = vmatpush2.msra.mxu0 0.0
    %86 = vmatprep.subr.mxu0 0.0
    %87 = vmatpush2.msra.mxu0 0.0
    %88 = vmatprep.subr.mxu0 0.0
    %89 = vmatpush2.msra.mxu0 0.0
    %90 = vmatprep.subr.mxu0 0.0
    %91 = vmatpush2.msra.mxu0 0.0
    %92 = vmatprep.subr.mxu0 0.0
    %93 = vmatpush2.msra.mxu0 0.0
    %94 = vmatprep.subr.mxu0 0.0
    %95 = vmatpush2.msra.mxu0 0.0
    %96 = vmatprep.subr.mxu0 0.0
    %97 = vmatpush2.msra.mxu0 0.0
    %98 = vmatprep.subr.mxu0 0.0
    %99 = vmatpush2.msra.mxu0 0.0
    %100 = vmatprep.subr.mxu0 0.0
    %101 = vmatpush2.msra.mxu0 0.0
    %102 = vmatprep.subr.mxu0 0.0
    %103 = vmatpush2.msra.mxu0 0.0
    %104 = vmatprep.subr.mxu0 0.0
    %105 = vmatpush2.msra.mxu0 0.0
    %106 = vmatprep.subr.mxu0 0.0
    %107 = vmatpush2.msra.mxu0 0.0
    %108 = vmatprep.subr.mxu0 0.0
    %109 = vmatpush2.msra.mxu0 0.0
    %110 = vmatprep.mubr.f32.mxu0 0.0
    %111 = vmatmul.mubr.f32.gmra.mxu0 %v39
    %v112 = vpop.f32.mrf.mxu0
    %v113 = vadd.f32 0.0, %v112
    %v114 = vpop.f32.mrf.mxu0
    %v115 = vadd.f32 0.0, %v114
    %116 = vdwg.mxu0
    %v118 = vcombine.high %v33, %v33
    %v119 = vsel %vm41, %v33, 0
    %v121 = vsel %vm41, %v118, 0
    %123 = vmatprep.subr.mxu0 0.0
    %124 = vmatpush1.msra.mxu0 0.0
    %125 = vmatprep.subr.mxu0 0.0
    %126 = vmatpush1.msra.mxu0 0.0
    %127 = vmatprep.subr.mxu0 0.0
    %128 = vmatpush1.msra.mxu0 0.0
    %129 = vmatprep.subr.mxu0 0.0
    %130 = vmatpush1.msra.mxu0 0.0
    %131 = vmatprep.subr.mxu0 0.0
    %132 = vmatpush1.msra.mxu0 0.0
    %133 = vmatprep.subr.mxu0 0.0
    %134 = vmatpush1.msra.mxu0 0.0
    %135 = vmatprep.subr.mxu0 0.0
    %136 = vmatpush1.msra.mxu0 0.0
    %137 = vmatprep.subr.mxu0 0.0
    %138 = vmatpush1.msra.mxu0 0.0
    %139 = vmatprep.subr.mxu0 0.0
    %140 = vmatpush1.msra.mxu0 0.0
    %141 = vmatprep.subr.mxu0 0.0
    %142 = vmatpush1.msra.mxu0 0.0
    %143 = vmatprep.subr.mxu0 0.0
    %144 = vmatpush1.msra.mxu0 0.0
    %145 = vmatprep.subr.mxu0 0.0
    %146 = vmatpush1.msra.mxu0 0.0
    %147 = vmatprep.subr.mxu0 0.0
    %148 = vmatpush1.msra.mxu0 0.0
    %149 = vmatprep.subr.mxu0 0.0
    %150 = vmatpush1.msra.mxu0 0.0
    %151 = vmatprep.subr.mxu0 0.0
    %152 = vmatpush1.msra.mxu0 0.0
    %153 = vmatprep.subr.mxu0 %v121
    %154 = vmatpush1.msra.mxu0 %v119
    %155 = vmatprep.subr.mxu0 0.0
    %156 = vmatpush2.msra.mxu0 0.0
    %157 = vmatprep.subr.mxu0 0.0
    %158 = vmatpush2.msra.mxu0 0.0
    %159 = vmatprep.subr.mxu0 0.0
    %160 = vmatpush2.msra.mxu0 0.0
    %161 = vmatprep.subr.mxu0 0.0
    %162 = vmatpush2.msra.mxu0 0.0
    %163 = vmatprep.subr.mxu0 0.0
    %164 = vmatpush2.msra.mxu0 0.0
    %165 = vmatprep.subr.mxu0 0.0
    %166 = vmatpush2.msra.mxu0 0.0
    %167 = vmatprep.subr.mxu0 0.0
    %168 = vmatpush2.msra.mxu0 0.0
    %169 = vmatprep.subr.mxu0 0.0
    %170 = vmatpush2.msra.mxu0 0.0
    %171 = vmatprep.subr.mxu0 0.0
    %172 = vmatpush2.msra.mxu0 0.0
    %173 = vmatprep.subr.mxu0 0.0
    %174 = vmatpush2.msra.mxu0 0.0
    %175 = vmatprep.subr.mxu0 0.0
    %176 = vmatpush2.msra.mxu0 0.0
    %177 = vmatprep.subr.mxu0 0.0
    %178 = vmatpush2.msra.mxu0 0.0
    %179 = vmatprep.subr.mxu0 0.0
    %180 = vmatpush2.msra.mxu0 0.0
    %181 = vmatprep.subr.mxu0 0.0
    %182 = vmatpush2.msra.mxu0 0.0
    %183 = vmatprep.subr.mxu0 0.0
    %184 = vmatpush2.msra.mxu0 0.0
    %185 = vmatprep.subr.mxu0 0.0
    %186 = vmatpush2.msra.mxu0 0.0
    %187 = vmatprep.mubr.f32.mxu0 0.0
    %188 = vmatmul.mubr.f32.gmra.mxu0 %v39
    %v189 = vpop.f32.mrf.mxu0
    %v190 = vadd.f32 0.0, %v189
    %v191 = vpop.f32.mrf.mxu0
    %v192 = vadd.f32 0.0, %v191
    %193 = vdwg.mxu0
    %v194 = vld [vmem:[#allocation2] sm:$0xff]
    %v195 = vld [vmem:[#allocation2 + $0x8] sm:$0xff]
    %v196 = vld [vmem:[#allocation2 + $0x10] sm:$0xff]
    %v197 = vld [vmem:[#allocation2 + $0x18] sm:$0xff]
    %v198 = vld [vmem:[#allocation2 + $0x20] sm:$0xff]
    %v199 = vld [vmem:[#allocation2 + $0x28] sm:$0xff]
    %v200 = vld [vmem:[#allocation2 + $0x30] sm:$0xff]
    %v201 = vld [vmem:[#allocation2 + $0x38] sm:$0xff]
    %v202 = vld [vmem:[#allocation2 + $0x40] sm:$0xff]
    %v203 = vld [vmem:[#allocation2 + $0x48] sm:$0xff]
    %v204 = vld [vmem:[#allocation2 + $0x50] sm:$0xff]
    %v205 = vld [vmem:[#allocation2 + $0x58] sm:$0xff]
    %v206 = vld [vmem:[#allocation2 + $0x60] sm:$0xff]
    %v207 = vld [vmem:[#allocation2 + $0x68] sm:$0xff]
    %v208 = vld [vmem:[#allocation2 + $0x70] sm:$0xff]
    %v209 = vld [vmem:[#allocation2 + $0x78] sm:$0xff]
    %v210 = vld [vmem:[#allocation2 + $0x80] sm:$0xff]
    %v211 = vld [vmem:[#allocation2 + $0x88] sm:$0xff]
    %v212 = vld [vmem:[#allocation2 + $0x90] sm:$0xff]
    %v213 = vld [vmem:[#allocation2 + $0x98] sm:$0xff]
    %v214 = vld [vmem:[#allocation2 + $0xa0] sm:$0xff]
    %v215 = vld [vmem:[#allocation2 + $0xa8] sm:$0xff]
    %v216 = vld [vmem:[#allocation2 + $0xb0] sm:$0xff]
    %v217 = vld [vmem:[#allocation2 + $0xb8] sm:$0xff]
    %v218 = vld [vmem:[#allocation2 + $0xc0] sm:$0xff]
    %v219 = vld [vmem:[#allocation2 + $0xc8] sm:$0xff]
    %v220 = vld [vmem:[#allocation2 + $0xd0] sm:$0xff]
    %v221 = vld [vmem:[#allocation2 + $0xd8] sm:$0xff]
    %v222 = vld [vmem:[#allocation2 + $0xe0] sm:$0xff]
    %v223 = vld [vmem:[#allocation2 + $0xe8] sm:$0xff]
    %v224 = vld [vmem:[#allocation2 + $0xf0] sm:$0xff]
    %v225 = vld [vmem:[#allocation2 + $0xf8] sm:$0xff]
    %v226 = vld [vmem:[#allocation2 + $0x100] sm:$0xff]
    %v227 = vld [vmem:[#allocation2 + $0x108] sm:$0xff]
    %v228 = vld [vmem:[#allocation2 + $0x110] sm:$0xff]
    %v229 = vld [vmem:[#allocation2 + $0x118] sm:$0xff]
    %v230 = vld [vmem:[#allocation2 + $0x120] sm:$0xff]
    %v231 = vld [vmem:[#allocation2 + $0x128] sm:$0xff]
    %v232 = vld [vmem:[#allocation2 + $0x130] sm:$0xff]
    %v233 = vld [vmem:[#allocation2 + $0x138] sm:$0xff]
    %v234 = vld [vmem:[#allocation2 + $0x140] sm:$0xff]
    %v235 = vld [vmem:[#allocation2 + $0x148] sm:$0xff]
    %v236 = vld [vmem:[#allocation2 + $0x150] sm:$0xff]
    %v237 = vld [vmem:[#allocation2 + $0x158] sm:$0xff]
    %v238 = vld [vmem:[#allocation2 + $0x160] sm:$0xff]
    %v239 = vld [vmem:[#allocation2 + $0x168] sm:$0xff]
    %v240 = vld [vmem:[#allocation2 + $0x170] sm:$0xff]
    %v241 = vld [vmem:[#allocation2 + $0x178] sm:$0xff]
    %v242 = vld [vmem:[#allocation2 + $0x180] sm:$0xff]
    %v243 = vld [vmem:[#allocation2 + $0x188] sm:$0xff]
    %v244 = vld [vmem:[#allocation2 + $0x190] sm:$0xff]
    %v245 = vld [vmem:[#allocation2 + $0x198] sm:$0xff]
    %v246 = vld [vmem:[#allocation2 + $0x1a0] sm:$0xff]
    %v247 = vld [vmem:[#allocation2 + $0x1a8] sm:$0xff]
    %v248 = vld [vmem:[#allocation2 + $0x1b0] sm:$0xff]
    %v249 = vld [vmem:[#allocation2 + $0x1b8] sm:$0xff]
    %v250 = vld [vmem:[#allocation2 + $0x1c0] sm:$0xff]
    %v251 = vld [vmem:[#allocation2 + $0x1c8] sm:$0xff]
    %v252 = vld [vmem:[#allocation2 + $0x1d0] sm:$0xff]
    %v253 = vld [vmem:[#allocation2 + $0x1d8] sm:$0xff]
    %v254 = vld [vmem:[#allocation2 + $0x1e0] sm:$0xff]
    %v255 = vld [vmem:[#allocation2 + $0x1e8] sm:$0xff]
    %v256 = vld [vmem:[#allocation2 + $0x1f0] sm:$0xff]
    %v257 = vld [vmem:[#allocation2 + $0x1f8] sm:$0xff]
    %v258 = vld [vmem:[#allocation2 + $0x200] sm:$0xff]
    %v259 = vld [vmem:[#allocation2 + $0x208] sm:$0xff]
    %v260 = vld [vmem:[#allocation2 + $0x210] sm:$0xff]
    %v261 = vld [vmem:[#allocation2 + $0x218] sm:$0xff]
    %v262 = vld [vmem:[#allocation2 + $0x220] sm:$0xff]
    %v263 = vld [vmem:[#allocation2 + $0x228] sm:$0xff]
    %v264 = vld [vmem:[#allocation2 + $0x230] sm:$0xff]
    %v265 = vld [vmem:[#allocation2 + $0x238] sm:$0xff]
    %v266 = vld [vmem:[#allocation2 + $0x240] sm:$0xff]
    %v267 = vld [vmem:[#allocation2 + $0x248] sm:$0xff]
    %v268 = vld [vmem:[#allocation2 + $0x250] sm:$0xff]
    %v269 = vld [vmem:[#allocation2 + $0x258] sm:$0xff]
    %v270 = vld [vmem:[#allocation2 + $0x260] sm:$0xff]
    %v271 = vld [vmem:[#allocation2 + $0x268] sm:$0xff]
    %v272 = vld [vmem:[#allocation2 + $0x270] sm:$0xff]
    %v273 = vld [vmem:[#allocation2 + $0x278] sm:$0xff]
    %v274 = vld [vmem:[#allocation2 + $0x280] sm:$0xff]
    %v275 = vld [vmem:[#allocation2 + $0x288] sm:$0xff]
    %v276 = vld [vmem:[#allocation2 + $0x290] sm:$0xff]
    %v277 = vld [vmem:[#allocation2 + $0x298] sm:$0xff]
    %v278 = vld [vmem:[#allocation2 + $0x2a0] sm:$0xff]
    %v279 = vld [vmem:[#allocation2 + $0x2a8] sm:$0xff]
    %v280 = vld [vmem:[#allocation2 + $0x2b0] sm:$0xff]
    %v281 = vld [vmem:[#allocation2 + $0x2b8] sm:$0xff]
    %v282 = vld [vmem:[#allocation2 + $0x2c0] sm:$0xff]
    %v283 = vld [vmem:[#allocation2 + $0x2c8] sm:$0xff]
    %v284 = vld [vmem:[#allocation2 + $0x2d0] sm:$0xff]
    %v285 = vld [vmem:[#allocation2 + $0x2d8] sm:$0xff]
    %v286 = vld [vmem:[#allocation2 + $0x2e0] sm:$0xff]
    %v287 = vld [vmem:[#allocation2 + $0x2e8] sm:$0xff]
    %v288 = vld [vmem:[#allocation2 + $0x2f0] sm:$0xff]
    %v289 = vld [vmem:[#allocation2 + $0x2f8] sm:$0xff]
    %v290 = vld [vmem:[#allocation2 + $0x300] sm:$0xff]
    %v291 = vld [vmem:[#allocation2 + $0x308] sm:$0xff]
    %v292 = vld [vmem:[#allocation2 + $0x310] sm:$0xff]
    %v293 = vld [vmem:[#allocation2 + $0x318] sm:$0xff]
    %v294 = vld [vmem:[#allocation2 + $0x320] sm:$0xff]
    %v295 = vld [vmem:[#allocation2 + $0x328] sm:$0xff]
    %v296 = vld [vmem:[#allocation2 + $0x330] sm:$0xff]
    %v297 = vld [vmem:[#allocation2 + $0x338] sm:$0xff]
    %v298 = vld [vmem:[#allocation2 + $0x340] sm:$0xff]
    %v299 = vld [vmem:[#allocation2 + $0x348] sm:$0xff]
    %v300 = vld [vmem:[#allocation2 + $0x350] sm:$0xff]
    %v301 = vld [vmem:[#allocation2 + $0x358] sm:$0xff]
    %v302 = vld [vmem:[#allocation2 + $0x360] sm:$0xff]
    %v303 = vld [vmem:[#allocation2 + $0x368] sm:$0xff]
    %v304 = vld [vmem:[#allocation2 + $0x370] sm:$0xff]
    %v305 = vld [vmem:[#allocation2 + $0x378] sm:$0xff]
    %v306 = vld [vmem:[#allocation2 + $0x380] sm:$0xff]
    %v307 = vld [vmem:[#allocation2 + $0x388] sm:$0xff]
    %v308 = vld [vmem:[#allocation2 + $0x390] sm:$0xff]
    %v309 = vld [vmem:[#allocation2 + $0x398] sm:$0xff]
    %v310 = vld [vmem:[#allocation2 + $0x3a0] sm:$0xff]
    %v311 = vld [vmem:[#allocation2 + $0x3a8] sm:$0xff]
    %v312 = vld [vmem:[#allocation2 + $0x3b0] sm:$0xff]
    %v313 = vld [vmem:[#allocation2 + $0x3b8] sm:$0xff]
    %v314 = vld [vmem:[#allocation2 + $0x3c0] sm:$0xff]
    %v315 = vld [vmem:[#allocation2 + $0x3c8] sm:$0xff]
    %v316 = vld [vmem:[#allocation2 + $0x3d0] sm:$0xff]
    %v317 = vld [vmem:[#allocation2 + $0x3d8] sm:$0xff]
    %v318 = vld [vmem:[#allocation2 + $0x3e0] sm:$0xff]
    %v319 = vld [vmem:[#allocation2 + $0x3e8] sm:$0xff]
    %v320 = vld [vmem:[#allocation2 + $0x3f0] sm:$0xff]
    %v321 = vld [vmem:[#allocation2 + $0x3f8] sm:$0xff]
    %v322 = vld [vmem:[#allocation2 + $0x400] sm:$0xff]
    %v323 = vld [vmem:[#allocation2 + $0x408] sm:$0xff]
    %v324 = vld [vmem:[#allocation2 + $0x410] sm:$0xff]
    %v325 = vld [vmem:[#allocation2 + $0x418] sm:$0xff]
    %v326 = vld [vmem:[#allocation2 + $0x420] sm:$0xff]
    %v327 = vld [vmem:[#allocation2 + $0x428] sm:$0xff]
    %v328 = vld [vmem:[#allocation2 + $0x430] sm:$0xff]
    %v329 = vld [vmem:[#allocation2 + $0x438] sm:$0xff]
    %v330 = vld [vmem:[#allocation2 + $0x440] sm:$0xff]
    %v331 = vld [vmem:[#allocation2 + $0x448] sm:$0xff]
    %v332 = vld [vmem:[#allocation2 + $0x450] sm:$0xff]
    %v333 = vld [vmem:[#allocation2 + $0x458] sm:$0xff]
    %v334 = vld [vmem:[#allocation2 + $0x460] sm:$0xff]
    %v335 = vld [vmem:[#allocation2 + $0x468] sm:$0xff]
    %v336 = vld [vmem:[#allocation2 + $0x470] sm:$0xff]
    %v337 = vld [vmem:[#allocation2 + $0x478] sm:$0xff]
    %v338 = vld [vmem:[#allocation2 + $0x480] sm:$0xff]
    %v339 = vld [vmem:[#allocation2 + $0x488] sm:$0xff]
    %v340 = vld [vmem:[#allocation2 + $0x490] sm:$0xff]
    %v341 = vld [vmem:[#allocation2 + $0x498] sm:$0xff]
    %v342 = vld [vmem:[#allocation2 + $0x4a0] sm:$0xff]
    %v343 = vld [vmem:[#allocation2 + $0x4a8] sm:$0xff]
    %v344 = vld [vmem:[#allocation2 + $0x4b0] sm:$0xff]
    %v345 = vld [vmem:[#allocation2 + $0x4b8] sm:$0xff]
    %v346 = vld [vmem:[#allocation2 + $0x4c0] sm:$0xff]
    %v347 = vld [vmem:[#allocation2 + $0x4c8] sm:$0xff]
    %v348 = vld [vmem:[#allocation2 + $0x4d0] sm:$0xff]
    %v349 = vld [vmem:[#allocation2 + $0x4d8] sm:$0xff]
    %v350 = vld [vmem:[#allocation2 + $0x4e0] sm:$0xff]
    %v351 = vld [vmem:[#allocation2 + $0x4e8] sm:$0xff]
    %v352 = vld [vmem:[#allocation2 + $0x4f0] sm:$0xff]
    %v353 = vld [vmem:[#allocation2 + $0x4f8] sm:$0xff]
    %v354 = vld [vmem:[#allocation2 + $0x500] sm:$0xff]
    %v355 = vld [vmem:[#allocation2 + $0x508] sm:$0xff]
    %v356 = vld [vmem:[#allocation2 + $0x510] sm:$0xff]
    %v357 = vld [vmem:[#allocation2 + $0x518] sm:$0xff]
    %v358 = vld [vmem:[#allocation2 + $0x520] sm:$0xff]
    %v359 = vld [vmem:[#allocation2 + $0x528] sm:$0xff]
    %v360 = vld [vmem:[#allocation2 + $0x530] sm:$0xff]
    %v361 = vld [vmem:[#allocation2 + $0x538] sm:$0xff]
    %v362 = vld [vmem:[#allocation2 + $0x540] sm:$0xff]
    %v363 = vld [vmem:[#allocation2 + $0x548] sm:$0xff]
    %v364 = vld [vmem:[#allocation2 + $0x550] sm:$0xff]
    %v365 = vld [vmem:[#allocation2 + $0x558] sm:$0xff]
    %v366 = vld [vmem:[#allocation2 + $0x560] sm:$0xff]
    %v367 = vld [vmem:[#allocation2 + $0x568] sm:$0xff]
    %v368 = vld [vmem:[#allocation2 + $0x570] sm:$0xff]
    %v369 = vld [vmem:[#allocation2 + $0x578] sm:$0xff]
    %v370 = vld [vmem:[#allocation2 + $0x580] sm:$0xff]
    %v371 = vld [vmem:[#allocation2 + $0x588] sm:$0xff]
    %v372 = vld [vmem:[#allocation2 + $0x590] sm:$0xff]
    %v373 = vld [vmem:[#allocation2 + $0x598] sm:$0xff]
    %v374 = vld [vmem:[#allocation2 + $0x5a0] sm:$0xff]
    %v375 = vld [vmem:[#allocation2 + $0x5a8] sm:$0xff]
    %v376 = vld [vmem:[#allocation2 + $0x5b0] sm:$0xff]
    %v377 = vld [vmem:[#allocation2 + $0x5b8] sm:$0xff]
    %v378 = vld [vmem:[#allocation2 + $0x5c0] sm:$0xff]
    %v379 = vld [vmem:[#allocation2 + $0x5c8] sm:$0xff]
    %v380 = vld [vmem:[#allocation2 + $0x5d0] sm:$0xff]
    %v381 = vld [vmem:[#allocation2 + $0x5d8] sm:$0xff]
    %v382 = vld [vmem:[#allocation2 + $0x5e0] sm:$0xff]
    %v383 = vld [vmem:[#allocation2 + $0x5e8] sm:$0xff]
    %v384 = vld [vmem:[#allocation2 + $0x5f0] sm:$0xff]
    %v385 = vld [vmem:[#allocation2 + $0x5f8] sm:$0xff]
    %v386 = vld [vmem:[#allocation2 + $0x600] sm:$0xff]
    %v387 = vld [vmem:[#allocation2 + $0x608] sm:$0xff]
    %v388 = vld [vmem:[#allocation2 + $0x610] sm:$0xff]
    %v389 = vld [vmem:[#allocation2 + $0x618] sm:$0xff]
    %v390 = vld [vmem:[#allocation2 + $0x620] sm:$0xff]
    %v391 = vld [vmem:[#allocation2 + $0x628] sm:$0xff]
    %v392 = vld [vmem:[#allocation2 + $0x630] sm:$0xff]
    %v393 = vld [vmem:[#allocation2 + $0x638] sm:$0xff]
    %v394 = vld [vmem:[#allocation2 + $0x640] sm:$0xff]
    %v395 = vld [vmem:[#allocation2 + $0x648] sm:$0xff]
    %v396 = vld [vmem:[#allocation2 + $0x650] sm:$0xff]
    %v397 = vld [vmem:[#allocation2 + $0x658] sm:$0xff]
    %v398 = vld [vmem:[#allocation2 + $0x660] sm:$0xff]
    %v399 = vld [vmem:[#allocation2 + $0x668] sm:$0xff]
    %v400 = vld [vmem:[#allocation2 + $0x670] sm:$0xff]
    %v401 = vld [vmem:[#allocation2 + $0x678] sm:$0xff]
    %v402 = vld [vmem:[#allocation2 + $0x680] sm:$0xff]
    %v403 = vld [vmem:[#allocation2 + $0x688] sm:$0xff]
    %v404 = vld [vmem:[#allocation2 + $0x690] sm:$0xff]
    %v405 = vld [vmem:[#allocation2 + $0x698] sm:$0xff]
    %v406 = vld [vmem:[#allocation2 + $0x6a0] sm:$0xff]
    %v407 = vld [vmem:[#allocation2 + $0x6a8] sm:$0xff]
    %v408 = vld [vmem:[#allocation2 + $0x6b0] sm:$0xff]
    %v409 = vld [vmem:[#allocation2 + $0x6b8] sm:$0xff]
    %v410 = vld [vmem:[#allocation2 + $0x6c0] sm:$0xff]
    %v411 = vld [vmem:[#allocation2 + $0x6c8] sm:$0xff]
    %v412 = vld [vmem:[#allocation2 + $0x6d0] sm:$0xff]
    %v413 = vld [vmem:[#allocation2 + $0x6d8] sm:$0xff]
    %v414 = vld [vmem:[#allocation2 + $0x6e0] sm:$0xff]
    %v415 = vld [vmem:[#allocation2 + $0x6e8] sm:$0xff]
    %v416 = vld [vmem:[#allocation2 + $0x6f0] sm:$0xff]
    %v417 = vld [vmem:[#allocation2 + $0x6f8] sm:$0xff]
    %v418 = vld [vmem:[#allocation2 + $0x700] sm:$0xff]
    %v419 = vld [vmem:[#allocation2 + $0x708] sm:$0xff]
    %v420 = vld [vmem:[#allocation2 + $0x710] sm:$0xff]
    %v421 = vld [vmem:[#allocation2 + $0x718] sm:$0xff]
    %v422 = vld [vmem:[#allocation2 + $0x720] sm:$0xff]
    %v423 = vld [vmem:[#allocation2 + $0x728] sm:$0xff]
    %v424 = vld [vmem:[#allocation2 + $0x730] sm:$0xff]
    %v425 = vld [vmem:[#allocation2 + $0x738] sm:$0xff]
    %v426 = vld [vmem:[#allocation2 + $0x740] sm:$0xff]
    %v427 = vld [vmem:[#allocation2 + $0x748] sm:$0xff]
    %v428 = vld [vmem:[#allocation2 + $0x750] sm:$0xff]
    %v429 = vld [vmem:[#allocation2 + $0x758] sm:$0xff]
    %v430 = vld [vmem:[#allocation2 + $0x760] sm:$0xff]
    %v431 = vld [vmem:[#allocation2 + $0x768] sm:$0xff]
    %v432 = vld [vmem:[#allocation2 + $0x770] sm:$0xff]
    %v433 = vld [vmem:[#allocation2 + $0x778] sm:$0xff]
    %v434 = vld [vmem:[#allocation2 + $0x780] sm:$0xff]
    %v435 = vld [vmem:[#allocation2 + $0x788] sm:$0xff]
    %v436 = vld [vmem:[#allocation2 + $0x790] sm:$0xff]
    %v437 = vld [vmem:[#allocation2 + $0x798] sm:$0xff]
    %v438 = vld [vmem:[#allocation2 + $0x7a0] sm:$0xff]
    %v439 = vld [vmem:[#allocation2 + $0x7a8] sm:$0xff]
    %v440 = vld [vmem:[#allocation2 + $0x7b0] sm:$0xff]
    %v441 = vld [vmem:[#allocation2 + $0x7b8] sm:$0xff]
    %v442 = vld [vmem:[#allocation2 + $0x7c0] sm:$0xff]
    %v443 = vld [vmem:[#allocation2 + $0x7c8] sm:$0xff]
    %v444 = vld [vmem:[#allocation2 + $0x7d0] sm:$0xff]
    %v445 = vld [vmem:[#allocation2 + $0x7d8] sm:$0xff]
    %v446 = vld [vmem:[#allocation2 + $0x7e0] sm:$0xff]
    %v447 = vld [vmem:[#allocation2 + $0x7e8] sm:$0xff]
    %v448 = vld [vmem:[#allocation2 + $0x7f0] sm:$0xff]
    %v449 = vld [vmem:[#allocation2 + $0x7f8] sm:$0xff]
    %v450 = vld [vmem:[%s3] sm:$0xff]
    %v451 = vld [vmem:[%s3 + $0x8] sm:$0xff]
    %453 = vset.pattern.permute.xlu0 0
    %454 = vperm.xlu0 %453, %v450
    %v455 = vpop.permute.xlu0 %454
    %458 = vset.pattern.permute.xlu0 0
    %459 = vperm.xlu0 %458, %v451
    %v460 = vpop.permute.xlu0 %459
    %462 = vmatprep.subr.mxu0 %v315
    %463 = vmatpush1.msra.mxu0 %v314
    %464 = vmatprep.subr.mxu0 %v307
    %465 = vmatpush1.msra.mxu0 %v306
    %466 = vmatprep.subr.mxu0 %v299
    %467 = vmatpush1.msra.mxu0 %v298
    %468 = vmatprep.subr.mxu0 %v291
    %469 = vmatpush1.msra.mxu0 %v290
    %470 = vmatprep.subr.mxu0 %v283
    %471 = vmatpush1.msra.mxu0 %v282
    %472 = vmatprep.subr.mxu0 %v275
    %473 = vmatpush1.msra.mxu0 %v274
    %474 = vmatprep.subr.mxu0 %v267
    %475 = vmatpush1.msra.mxu0 %v266
    %476 = vmatprep.subr.mxu0 %v259
    %477 = vmatpush1.msra.mxu0 %v258
    %478 = vmatprep.subr.mxu0 %v251
    %479 = vmatpush1.msra.mxu0 %v250
    %480 = vmatprep.subr.mxu0 %v243
    %481 = vmatpush1.msra.mxu0 %v242
    %482 = vmatprep.subr.mxu0 %v235
    %483 = vmatpush1.msra.mxu0 %v234
    %484 = vmatprep.subr.mxu0 %v227
    %485 = vmatpush1.msra.mxu0 %v226
    %486 = vmatprep.subr.mxu0 %v219
    %487 = vmatpush1.msra.mxu0 %v218
    %488 = vmatprep.subr.mxu0 %v211
    %489 = vmatpush1.msra.mxu0 %v210
    %490 = vmatprep.subr.mxu0 %v203
    %491 = vmatpush1.msra.mxu0 %v202
    %492 = vmatprep.subr.mxu0 %v195
    %493 = vmatpush1.msra.mxu0 %v194
    %494 = vmatprep.subr.mxu0 %v443
    %495 = vmatpush2.msra.mxu0 %v442
    %496 = vmatprep.subr.mxu0 %v435
    %497 = vmatpush2.msra.mxu0 %v434
    %498 = vmatprep.subr.mxu0 %v427
    %499 = vmatpush2.msra.mxu0 %v426
    %500 = vmatprep.subr.mxu0 %v419
    %501 = vmatpush2.msra.mxu0 %v418
    %502 = vmatprep.subr.mxu0 %v411
    %503 = vmatpush2.msra.mxu0 %v410
    %504 = vmatprep.subr.mxu0 %v403
    %505 = vmatpush2.msra.mxu0 %v402
    %506 = vmatprep.subr.mxu0 %v395
    %507 = vmatpush2.msra.mxu0 %v394
    %508 = vmatprep.subr.mxu0 %v387
    %509 = vmatpush2.msra.mxu0 %v386
    %510 = vmatprep.subr.mxu0 %v379
    %511 = vmatpush2.msra.mxu0 %v378
    %512 = vmatprep.subr.mxu0 %v371
    %513 = vmatpush2.msra.mxu0 %v370
    %514 = vmatprep.subr.mxu0 %v363
    %515 = vmatpush2.msra.mxu0 %v362
    %516 = vmatprep.subr.mxu0 %v355
    %517 = vmatpush2.msra.mxu0 %v354
    %518 = vmatprep.subr.mxu0 %v347
    %519 = vmatpush2.msra.mxu0 %v346
    %520 = vmatprep.subr.mxu0 %v339
    %521 = vmatpush2.msra.mxu0 %v338
    %522 = vmatprep.subr.mxu0 %v331
    %523 = vmatpush2.msra.mxu0 %v330
    %524 = vmatprep.subr.mxu0 %v323
    %525 = vmatpush2.msra.mxu0 %v322
    %526 = vmatprep.mubr.f32.mxu0 %v115
    %527 = vmatmul.mubr.f32.gmra.mxu0 %v113
    %v528 = vpop.f32.mrf.mxu0
    %v529 = vadd.f32 %v455, %v528
    %v530 = vpop.f32.mrf.mxu0
    %v531 = vadd.f32 %v455, %v530
    %532 = vmatprep.mubr.f32.mxu0 %v192
    %533 = vmatmul.mubr.f32.gmra.mxu0 %v190
    %v534 = vpop.f32.mrf.mxu0
    %v535 = vadd.f32 %v460, %v534
    %v536 = vpop.f32.mrf.mxu0
    %v537 = vadd.f32 %v460, %v536
    %538 = vdwg.mxu0
    %539 = vmatprep.subr.mxu0 %v317
    %540 = vmatpush1.msra.mxu0 %v316
    %541 = vmatprep.subr.mxu0 %v309
    %542 = vmatpush1.msra.mxu0 %v308
    %543 = vmatprep.subr.mxu0 %v301
    %544 = vmatpush1.msra.mxu0 %v300
    %545 = vmatprep.subr.mxu0 %v293
    %546 = vmatpush1.msra.mxu0 %v292
    %547 = vmatprep.subr.mxu0 %v285
    %548 = vmatpush1.msra.mxu0 %v284
    %549 = vmatprep.subr.mxu0 %v277
    %550 = vmatpush1.msra.mxu0 %v276
    %551 = vmatprep.subr.mxu0 %v269
    %552 = vmatpush1.msra.mxu0 %v268
    %553 = vmatprep.subr.mxu0 %v261
    %554 = vmatpush1.msra.mxu0 %v260
    %555 = vmatprep.subr.mxu0 %v253
    %556 = vmatpush1.msra.mxu0 %v252
    %557 = vmatprep.subr.mxu0 %v245
    %558 = vmatpush1.msra.mxu0 %v244
    %559 = vmatprep.subr.mxu0 %v237
    %560 = vmatpush1.msra.mxu0 %v236
    %561 = vmatprep.subr.mxu0 %v229
    %562 = vmatpush1.msra.mxu0 %v228
    %563 = vmatprep.subr.mxu0 %v221
    %564 = vmatpush1.msra.mxu0 %v220
    %565 = vmatprep.subr.mxu0 %v213
    %566 = vmatpush1.msra.mxu0 %v212
    %567 = vmatprep.subr.mxu0 %v205
    %568 = vmatpush1.msra.mxu0 %v204
    %569 = vmatprep.subr.mxu0 %v197
    %570 = vmatpush1.msra.mxu0 %v196
    %571 = vmatprep.subr.mxu0 %v445
    %572 = vmatpush2.msra.mxu0 %v444
    %573 = vmatprep.subr.mxu0 %v437
    %574 = vmatpush2.msra.mxu0 %v436
    %575 = vmatprep.subr.mxu0 %v429
    %576 = vmatpush2.msra.mxu0 %v428
    %577 = vmatprep.subr.mxu0 %v421
    %578 = vmatpush2.msra.mxu0 %v420
    %579 = vmatprep.subr.mxu0 %v413
    %580 = vmatpush2.msra.mxu0 %v412
    %581 = vmatprep.subr.mxu0 %v405
    %582 = vmatpush2.msra.mxu0 %v404
    %583 = vmatprep.subr.mxu0 %v397
    %584 = vmatpush2.msra.mxu0 %v396
    %585 = vmatprep.subr.mxu0 %v389
    %586 = vmatpush2.msra.mxu0 %v388
    %587 = vmatprep.subr.mxu0 %v381
    %588 = vmatpush2.msra.mxu0 %v380
    %589 = vmatprep.subr.mxu0 %v373
    %590 = vmatpush2.msra.mxu0 %v372
    %591 = vmatprep.subr.mxu0 %v365
    %592 = vmatpush2.msra.mxu0 %v364
    %593 = vmatprep.subr.mxu0 %v357
    %594 = vmatpush2.msra.mxu0 %v356
    %595 = vmatprep.subr.mxu0 %v349
    %596 = vmatpush2.msra.mxu0 %v348
    %597 = vmatprep.subr.mxu0 %v341
    %598 = vmatpush2.msra.mxu0 %v340
    %599 = vmatprep.subr.mxu0 %v333
    %600 = vmatpush2.msra.mxu0 %v332
    %601 = vmatprep.subr.mxu0 %v325
    %602 = vmatpush2.msra.mxu0 %v324
    %603 = vmatprep.mubr.f32.mxu0 %v115
    %604 = vmatmul.mubr.f32.gmra.mxu0 %v113
    %v605 = vpop.f32.mrf.mxu0
    %v606 = vadd.f32 %v455, %v605
    %v607 = vpop.f32.mrf.mxu0
    %v608 = vadd.f32 %v455, %v607
    %609 = vmatprep.mubr.f32.mxu0 %v192
    %610 = vmatmul.mubr.f32.gmra.mxu0 %v190
    %v611 = vpop.f32.mrf.mxu0
    %v612 = vadd.f32 %v460, %v611
    %v613 = vpop.f32.mrf.mxu0
    %v614 = vadd.f32 %v460, %v613
    %615 = vdwg.mxu0
    %616 = vmatprep.subr.mxu0 %v319
    %617 = vmatpush1.msra.mxu0 %v318
    %618 = vmatprep.subr.mxu0 %v311
    %619 = vmatpush1.msra.mxu0 %v310
    %620 = vmatprep.subr.mxu0 %v303
    %621 = vmatpush1.msra.mxu0 %v302
    %622 = vmatprep.subr.mxu0 %v295
    %623 = vmatpush1.msra.mxu0 %v294
    %624 = vmatprep.subr.mxu0 %v287
    %625 = vmatpush1.msra.mxu0 %v286
    %626 = vmatprep.subr.mxu0 %v279
    %627 = vmatpush1.msra.mxu0 %v278
    %628 = vmatprep.subr.mxu0 %v271
    %629 = vmatpush1.msra.mxu0 %v270
    %630 = vmatprep.subr.mxu0 %v263
    %631 = vmatpush1.msra.mxu0 %v262
    %632 = vmatprep.subr.mxu0 %v255
    %633 = vmatpush1.msra.mxu0 %v254
    %634 = vmatprep.subr.mxu0 %v247
    %635 = vmatpush1.msra.mxu0 %v246
    %636 = vmatprep.subr.mxu0 %v239
    %637 = vmatpush1.msra.mxu0 %v238
    %638 = vmatprep.subr.mxu0 %v231
    %639 = vmatpush1.msra.mxu0 %v230
    %640 = vmatprep.subr.mxu0 %v223
    %641 = vmatpush1.msra.mxu0 %v222
    %642 = vmatprep.subr.mxu0 %v215
    %643 = vmatpush1.msra.mxu0 %v214
    %644 = vmatprep.subr.mxu0 %v207
    %645 = vmatpush1.msra.mxu0 %v206
    %646 = vmatprep.subr.mxu0 %v199
    %647 = vmatpush1.msra.mxu0 %v198
    %648 = vmatprep.subr.mxu0 %v447
    %649 = vmatpush2.msra.mxu0 %v446
    %650 = vmatprep.subr.mxu0 %v439
    %651 = vmatpush2.msra.mxu0 %v438
    %652 = vmatprep.subr.mxu0 %v431
    %653 = vmatpush2.msra.mxu0 %v430
    %654 = vmatprep.subr.mxu0 %v423
    %655 = vmatpush2.msra.mxu0 %v422
    %656 = vmatprep.subr.mxu0 %v415
    %657 = vmatpush2.msra.mxu0 %v414
    %658 = vmatprep.subr.mxu0 %v407
    %659 = vmatpush2.msra.mxu0 %v406
    %660 = vmatprep.subr.mxu0 %v399
    %661 = vmatpush2.msra.mxu0 %v398
    %662 = vmatprep.subr.mxu0 %v391
    %663 = vmatpush2.msra.mxu0 %v390
    %664 = vmatprep.subr.mxu0 %v383
    %665 = vmatpush2.msra.mxu0 %v382
    %666 = vmatprep.subr.mxu0 %v375
    %667 = vmatpush2.msra.mxu0 %v374
    %668 = vmatprep.subr.mxu0 %v367
    %669 = vmatpush2.msra.mxu0 %v366
    %670 = vmatprep.subr.mxu0 %v359
    %671 = vmatpush2.msra.mxu0 %v358
    %672 = vmatprep.subr.mxu0 %v351
    %673 = vmatpush2.msra.mxu0 %v350
    %674 = vmatprep.subr.mxu0 %v343
    %675 = vmatpush2.msra.mxu0 %v342
    %676 = vmatprep.subr.mxu0 %v335
    %677 = vmatpush2.msra.mxu0 %v334
    %678 = vmatprep.subr.mxu0 %v327
    %679 = vmatpush2.msra.mxu0 %v326
    %680 = vmatprep.mubr.f32.mxu0 %v115
    %681 = vmatmul.mubr.f32.gmra.mxu0 %v113
    %v682 = vpop.f32.mrf.mxu0
    %v683 = vadd.f32 %v455, %v682
    %v684 = vpop.f32.mrf.mxu0
    %v685 = vadd.f32 %v455, %v684
    %686 = vmatprep.mubr.f32.mxu0 %v192
    %687 = vmatmul.mubr.f32.gmra.mxu0 %v190
    %v688 = vpop.f32.mrf.mxu0
    %v689 = vadd.f32 %v460, %v688
    %v690 = vpop.f32.mrf.mxu0
    %v691 = vadd.f32 %v460, %v690
    %692 = vdwg.mxu0
    %693 = vmatprep.subr.mxu0 %v321
    %694 = vmatpush1.msra.mxu0 %v320
    %695 = vmatprep.subr.mxu0 %v313
    %696 = vmatpush1.msra.mxu0 %v312
    %697 = vmatprep.subr.mxu0 %v305
    %698 = vmatpush1.msra.mxu0 %v304
    %699 = vmatprep.subr.mxu0 %v297
    %700 = vmatpush1.msra.mxu0 %v296
    %701 = vmatprep.subr.mxu0 %v289
    %702 = vmatpush1.msra.mxu0 %v288
    %703 = vmatprep.subr.mxu0 %v281
    %704 = vmatpush1.msra.mxu0 %v280
    %705 = vmatprep.subr.mxu0 %v273
    %706 = vmatpush1.msra.mxu0 %v272
    %707 = vmatprep.subr.mxu0 %v265
    %708 = vmatpush1.msra.mxu0 %v264
    %709 = vmatprep.subr.mxu0 %v257
    %710 = vmatpush1.msra.mxu0 %v256
    %711 = vmatprep.subr.mxu0 %v249
    %712 = vmatpush1.msra.mxu0 %v248
    %713 = vmatprep.subr.mxu0 %v241
    %714 = vmatpush1.msra.mxu0 %v240
    %715 = vmatprep.subr.mxu0 %v233
    %716 = vmatpush1.msra.mxu0 %v232
    %717 = vmatprep.subr.mxu0 %v225
    %718 = vmatpush1.msra.mxu0 %v224
    %719 = vmatprep.subr.mxu0 %v217
    %720 = vmatpush1.msra.mxu0 %v216
    %721 = vmatprep.subr.mxu0 %v209
    %722 = vmatpush1.msra.mxu0 %v208
    %723 = vmatprep.subr.mxu0 %v201
    %724 = vmatpush1.msra.mxu0 %v200
    %725 = vmatprep.subr.mxu0 %v449
    %726 = vmatpush2.msra.mxu0 %v448
    %727 = vmatprep.subr.mxu0 %v441
    %728 = vmatpush2.msra.mxu0 %v440
    %729 = vmatprep.subr.mxu0 %v433
    %730 = vmatpush2.msra.mxu0 %v432
    %731 = vmatprep.subr.mxu0 %v425
    %732 = vmatpush2.msra.mxu0 %v424
    %733 = vmatprep.subr.mxu0 %v417
    %734 = vmatpush2.msra.mxu0 %v416
    %735 = vmatprep.subr.mxu0 %v409
    %736 = vmatpush2.msra.mxu0 %v408
    %737 = vmatprep.subr.mxu0 %v401
    %738 = vmatpush2.msra.mxu0 %v400
    %739 = vmatprep.subr.mxu0 %v393
    %740 = vmatpush2.msra.mxu0 %v392
    %741 = vmatprep.subr.mxu0 %v385
    %742 = vmatpush2.msra.mxu0 %v384
    %743 = vmatprep.subr.mxu0 %v377
    %744 = vmatpush2.msra.mxu0 %v376
    %745 = vmatprep.subr.mxu0 %v369
    %746 = vmatpush2.msra.mxu0 %v368
    %747 = vmatprep.subr.mxu0 %v361
    %748 = vmatpush2.msra.mxu0 %v360
    %749 = vmatprep.subr.mxu0 %v353
    %750 = vmatpush2.msra.mxu0 %v352
    %751 = vmatprep.subr.mxu0 %v345
    %752 = vmatpush2.msra.mxu0 %v344
    %753 = vmatprep.subr.mxu0 %v337
    %754 = vmatpush2.msra.mxu0 %v336
    %755 = vmatprep.subr.mxu0 %v329
    %756 = vmatpush2.msra.mxu0 %v328
    %757 = vmatprep.mubr.f32.mxu0 %v115
    %758 = vmatmul.mubr.f32.gmra.mxu0 %v113
    %v759 = vpop.f32.mrf.mxu0
    %v760 = vadd.f32 %v455, %v759
    %v761 = vpop.f32.mrf.mxu0
    %v762 = vadd.f32 %v455, %v761
    %763 = vmatprep.mubr.f32.mxu0 %v192
    %764 = vmatmul.mubr.f32.gmra.mxu0 %v190
    %v765 = vpop.f32.mrf.mxu0
    %v766 = vadd.f32 %v460, %v765
    %v767 = vpop.f32.mrf.mxu0
    %v768 = vadd.f32 %v460, %v767
    %769 = vdwg.mxu0
    %770 = vst [vmem:[#allocation5] sm:$0xff] %v529
    %771 = vst [vmem:[#allocation5 + $0x8] sm:$0xff] %v531
    %772 = vst [vmem:[#allocation5 + $0x10] sm:$0xff] %v606
    %773 = vst [vmem:[#allocation5 + $0x18] sm:$0xff] %v608
    %774 = vst [vmem:[#allocation5 + $0x20] sm:$0xff] %v683
    %775 = vst [vmem:[#allocation5 + $0x28] sm:$0xff] %v685
    %776 = vst [vmem:[#allocation5 + $0x30] sm:$0xff] %v760
    %777 = vst [vmem:[#allocation5 + $0x38] sm:$0xff] %v762
    %778 = vst [vmem:[#allocation5 + $0x40] sm:$0xff] %v535
    %779 = vst [vmem:[#allocation5 + $0x48] sm:$0xff] %v537
    %780 = vst [vmem:[#allocation5 + $0x50] sm:$0xff] %v612
    %781 = vst [vmem:[#allocation5 + $0x58] sm:$0xff] %v614
    %782 = vst [vmem:[#allocation5 + $0x60] sm:$0xff] %v689
    %783 = vst [vmem:[#allocation5 + $0x68] sm:$0xff] %v691
    %784 = vst [vmem:[#allocation5 + $0x70] sm:$0xff] %v766
    %785 = vst [vmem:[#allocation5 + $0x78] sm:$0xff] %v768
    // Predicated region
    $region22: #{tpu_custom_call.1} parent=1 // pred_check
      _
    $region23: #{tpu_custom_call.1} parent=1 // pred_check_branch
      %787 = sbr.rel (0) target = $region25
    $region24: #{tpu_custom_call.1} parent=1 // pred_region
      %s789 = ssub.s32 2048, 2048
      %790 = vsyncadd [#allocation4], %s789
      %s791 = sshll.u32 [#allocation5], 4
      %s792 = int_to_ptr.vmem [resolvable:$true] %s791
      %797 = dma.vmem_to_hbm [thread:$0]  %s792, 2048, %s4, [#allocation4], 1024, 1024, 64
    $region25: #{tpu_custom_call.1} parent=1 // pred_fallthru
      _
    // Predicated region
    $region26: #{tpu_custom_call.1} parent=1 // pred_check
      _
    $region27: #{tpu_custom_call.1} parent=1 // pred_check_branch
      %799 = sbr.rel (0) target = $region29
    $region28: #{tpu_custom_call.1} parent=1 // pred_region
      %800 = dma.done [#allocation4], 2048
    $region29: #{tpu_custom_call.1} parent=1 // pred_fallthru
      _
    %801 = vsyncpa [#allocation3], 1
    %802 = vsyncpa [#allocation4], 1

</llo_original>
